<compile_context>
chip_gen: v7x
topology: tpu7x:2x2x1
jax: 0.10.0
libtpu: 0.0.40
codegen_flags: <defaults>
</compile_context>

<pallas_src>
import jax
import jax.numpy as jnp
from jax.experimental import pallas as pl
from jax.experimental.pallas import tpu as pltpu


def _round_up(n, m):
    return -(-n // m) * m


def _net1_kernel(x_ref, w_ref, b_ref, o_ref):
    # x_ref: (TB, F) native dtype   w_ref: (F, F) folded f32   b_ref: (1, F) f32
    x = x_ref[...].astype(jnp.float32)      # in-kernel upcast: free VPU work
    w = w_ref[...]
    b = b_ref[...]
    f = w.shape[0]                          # F = 5, static
    # Unrolled VPU FMA: o = b + sum_k x[:, k] * w[k, :].  Avoids MXU push/pop
    # bubbles for a matmul that would use <2% of the systolic array.
    acc = x[:, 0:1] * w[0:1, :] + b
    for k in range(1, f):
        acc = acc + x[:, k:k+1] * w[k:k+1, :]
    o_ref[...] = acc.astype(o_ref.dtype)


def net1_forward(x, w1, b1, w2, b2, scalar, *, block_rows=8192,
                 xla_fastpath_rows=1024):
    """x: (B, 5) any float dtype. w1: (10, 5), b1: (10,), w2: (5, 10),
    b2: (5,), scalar: (). Returns f32 (B, 5)."""
    x = jnp.asarray(x)                      # keep native dtype (bf16 stays bf16)
    B, F = x.shape
    f32 = jnp.float32

    w1 = jnp.asarray(w1, f32)               # (10, 5)  torch layout (out, in)
    b1 = jnp.asarray(b1, f32)               # (10,)
    w2 = jnp.asarray(w2, f32)               # (5, 10)
    b2 = jnp.asarray(b2, f32)               # (5,)
    s = jnp.asarray(scalar, f32)            # ()

    # Fold both linears and the scalar into one affine map, in f32 (exact).
    w_comb = (w1.T @ w2.T) * s                          # (F, F)
    b_comb = ((b1 @ w2.T + b2) * s).reshape(1, F)       # (1, F)
    out_dtype = f32

    # Tiny-batch fast path: pallas_call / grid setup overhead >> the ~50
    # flops/row of work; let XLA fuse the affine map directly.
    if xla_fastpath_rows and B <= xla_fastpath_rows:
        return (x.astype(f32) @ w_comb + b_comb).astype(out_dtype)

    # ---- batch tile sizing -------------------------------------------------
    # tb must be a multiple of 8 (sublane rule); F=5 is fine because the block
    # covers the full last dim.
    tb = min(max(8, (block_rows // 8) * 8), _round_up(B, 8))
    # Prefer >=2 grid steps once there's enough work so the "parallel" axis
    # can be sharded across v7x's two TensorCores.
    if B > 2048:
        tb = min(tb, _round_up(pl.cdiv(B, 2), 8))
    # VMEM accounting: a (tb, F) block is lane-padded to (tb, 128); the input
    # and output blocks are each double-buffered by the pipeline.
    in_b = x.dtype.itemsize
    out_b = jnp.dtype(out_dtype).itemsize
    per_row = 2 * 128 * (in_b + out_b)            # VMEM bytes per batch row
    vmem_budget = 48 * 1024 * 1024                # headroom under v7x's 64 MiB
    tb = min(tb, max(8, (vmem_budget // per_row) // 8 * 8))
    vmem_limit = int(min(max(tb * per_row + (4 << 20), 16 * 1024 * 1024),
                         56 * 1024 * 1024))

    # No pad/slice: partial last block -> clipped reads + masked writes.
    grid = (pl.cdiv(B, tb),)

    return pl.pallas_call(
        _net1_kernel,
        out_shape=jax.ShapeDtypeStruct((B, F), out_dtype),
        grid=grid,
        in_specs=[
            pl.BlockSpec((tb, F), lambda i: (i, 0)),   # x: tiled over batch
            pl.BlockSpec((F, F), lambda i: (0, 0)),    # folded weight: resident
            pl.BlockSpec((1, F), lambda i: (0, 0)),    # folded bias: resident
        ],
        out_specs=pl.BlockSpec((tb, F), lambda i: (i, 0)),
        compiler_params=pltpu.CompilerParams(
            dimension_semantics=("parallel",),         # v7x megacore sharding
            vmem_limit_bytes=vmem_limit),
    )(x, w_comb, b_comb)


if __name__ == "__main__":
    key = jax.random.PRNGKey(0)
    k_x, k_w1, k_b1, k_w2, k_b2, k_s, k_x2, k_x3 = jax.random.split(key, 8)

    # Deterministic parameter init (PyTorch-default-like uniform ranges).
    bound1 = 1.0 / (5.0 ** 0.5)
    w1 = jax.random.uniform(k_w1, (10, 5), jnp.float32, -bound1, bound1)
    b1 = jax.random.uniform(k_b1, (10,), jnp.float32, -bound1, bound1)
    bound2 = 1.0 / (10.0 ** 0.5)
    w2 = jax.random.uniform(k_w2, (5, 10), jnp.float32, -bound2, bound2)
    b2 = jax.random.uniform(k_b2, (5,), jnp.float32, -bound2, bound2)
    scalar = jax.random.uniform(k_s, (), jnp.float32)

    def ref_fn(xv):
        return ((xv @ w1.T + b1) @ w2.T + b2) * scalar

    # 1) Tiny batch: exercises the XLA fast path.
    B = 8
    x = jax.random.normal(k_x, (B, 5), dtype=jnp.float32)
    out = jax.block_until_ready(net1_forward(x, w1, b1, w2, b2, scalar))
    assert out.shape == (B, 5)
    assert jnp.allclose(out, ref_fn(x), atol=1e-5, rtol=1e-5)

    # 2) Ragged batch through the Pallas kernel: 3 grid steps, partial last
    #    block (masked writes, no wrapper pad/slice).
    B2 = 300
    x2 = jax.random.normal(k_x2, (B2, 5), dtype=jnp.float32)
    out2 = jax.block_until_ready(
        net1_forward(x2, w1, b1, w2, b2, scalar,
                     block_rows=128, xla_fastpath_rows=0))
    assert out2.shape == (B2, 5)
    assert jnp.allclose(out2, ref_fn(x2), atol=1e-5, rtol=1e-5)

    # 3) bf16 input through the Pallas kernel: native-dtype read + in-kernel
    #    upcast (halved HBM read traffic vs forced f32).
    x2_bf16 = x2.astype(jnp.bfloat16)
    out2b = jax.block_until_ready(
        net1_forward(x2_bf16, w1, b1, w2, b2, scalar,
                     block_rows=128, xla_fastpath_rows=0))
    assert out2b.dtype == jnp.float32
    assert jnp.allclose(out2b, ref_fn(x2_bf16.astype(jnp.float32)),
                        atol=1e-4, rtol=1e-4)

    # 4) Larger batch with default tiling: >=2 full-size blocks (megacore path).
    B3 = 4096
    x3 = jax.random.normal(k_x3, (B3, 5), dtype=jnp.float32)
    out3 = jax.block_until_ready(net1_forward(x3, w1, b1, w2, b2, scalar))
    assert out3.shape == (B3, 5)
    assert jnp.allclose(out3, ref_fn(x3), atol=1e-5, rtol=1e-5)

    print("KERNEL_OK")
</pallas_src>

<mosaic_0001>
module attributes {stable_mosaic.version = 11 : i64} {
  func.func @_net1_kernel(%arg0: i32, %arg1: memref<128x5xf32, #tpu.memory_space<vmem>>, %arg2: memref<5x5xf32, #tpu.memory_space<vmem>>, %arg3: memref<1x5xf32, #tpu.memory_space<vmem>>, %arg4: memref<128x5xf32, #tpu.memory_space<vmem>>) attributes {dimension_semantics = [#tpu.dimension_semantics<parallel>], iteration_bounds = array<i64: 3>, scalar_prefetch = 0 : i64, scratch_operands = 0 : i64, tpu.core_type = #tpu.core_type<tc>, window_params = [{transform_indices = @transform_0, window_bounds = array<i64: 128, 5>}, {pipeline_mode = #tpu.pipeline_mode<synchronous>, transform_indices = @transform_1, window_bounds = array<i64: 5, 5>}, {pipeline_mode = #tpu.pipeline_mode<synchronous>, transform_indices = @transform_2, window_bounds = array<i64: 1, 5>}, {transform_indices = @transform_3, window_bounds = array<i64: 128, 5>}]} {
    %c0 = arith.constant 0 : index
    %c0_0 = arith.constant 0 : index
    %0 = vector.load %arg1[%c0, %c0_0] : memref<128x5xf32, #tpu.memory_space<vmem>>, vector<128x5xf32>
    %c0_1 = arith.constant 0 : index
    %c0_2 = arith.constant 0 : index
    %1 = vector.load %arg2[%c0_1, %c0_2] : memref<5x5xf32, #tpu.memory_space<vmem>>, vector<5x5xf32>
    %c0_3 = arith.constant 0 : index
    %c0_4 = arith.constant 0 : index
    %2 = vector.load %arg3[%c0_3, %c0_4] : memref<1x5xf32, #tpu.memory_space<vmem>>, vector<1x5xf32>
    %3 = vector.extract_strided_slice %0 {offsets = [0, 0], sizes = [128, 1], strides = [1, 1]} : vector<128x5xf32> to vector<128x1xf32>
    %4 = vector.extract_strided_slice %1 {offsets = [0, 0], sizes = [1, 5], strides = [1, 1]} : vector<5x5xf32> to vector<1x5xf32>
    %5 = vector.broadcast %3 : vector<128x1xf32> to vector<128x5xf32>
    %6 = vector.broadcast %4 : vector<1x5xf32> to vector<128x5xf32>
    %7 = arith.mulf %5, %6 : vector<128x5xf32>
    %8 = vector.broadcast %2 : vector<1x5xf32> to vector<128x5xf32>
    %9 = arith.addf %7, %8 : vector<128x5xf32>
    %10 = vector.extract_strided_slice %0 {offsets = [0, 1], sizes = [128, 1], strides = [1, 1]} : vector<128x5xf32> to vector<128x1xf32>
    %11 = vector.extract_strided_slice %1 {offsets = [1, 0], sizes = [1, 5], strides = [1, 1]} : vector<5x5xf32> to vector<1x5xf32>
    %12 = vector.broadcast %10 : vector<128x1xf32> to vector<128x5xf32>
    %13 = vector.broadcast %11 : vector<1x5xf32> to vector<128x5xf32>
    %14 = arith.mulf %12, %13 : vector<128x5xf32>
    %15 = arith.addf %9, %14 : vector<128x5xf32>
    %16 = vector.extract_strided_slice %0 {offsets = [0, 2], sizes = [128, 1], strides = [1, 1]} : vector<128x5xf32> to vector<128x1xf32>
    %17 = vector.extract_strided_slice %1 {offsets = [2, 0], sizes = [1, 5], strides = [1, 1]} : vector<5x5xf32> to vector<1x5xf32>
    %18 = vector.broadcast %16 : vector<128x1xf32> to vector<128x5xf32>
    %19 = vector.broadcast %17 : vector<1x5xf32> to vector<128x5xf32>
    %20 = arith.mulf %18, %19 : vector<128x5xf32>
    %21 = arith.addf %15, %20 : vector<128x5xf32>
    %22 = vector.extract_strided_slice %0 {offsets = [0, 3], sizes = [128, 1], strides = [1, 1]} : vector<128x5xf32> to vector<128x1xf32>
    %23 = vector.extract_strided_slice %1 {offsets = [3, 0], sizes = [1, 5], strides = [1, 1]} : vector<5x5xf32> to vector<1x5xf32>
    %24 = vector.broadcast %22 : vector<128x1xf32> to vector<128x5xf32>
    %25 = vector.broadcast %23 : vector<1x5xf32> to vector<128x5xf32>
    %26 = arith.mulf %24, %25 : vector<128x5xf32>
    %27 = arith.addf %21, %26 : vector<128x5xf32>
    %28 = vector.extract_strided_slice %0 {offsets = [0, 4], sizes = [128, 1], strides = [1, 1]} : vector<128x5xf32> to vector<128x1xf32>
    %29 = vector.extract_strided_slice %1 {offsets = [4, 0], sizes = [1, 5], strides = [1, 1]} : vector<5x5xf32> to vector<1x5xf32>
    %30 = vector.broadcast %28 : vector<128x1xf32> to vector<128x5xf32>
    %31 = vector.broadcast %29 : vector<1x5xf32> to vector<128x5xf32>
    %32 = arith.mulf %30, %31 : vector<128x5xf32>
    %33 = arith.addf %27, %32 : vector<128x5xf32>
    %c0_5 = arith.constant 0 : index
    %c0_6 = arith.constant 0 : index
    %34 = vector.load %arg4[%c0_5, %c0_6] : memref<128x5xf32, #tpu.memory_space<vmem>>, vector<128x5xf32>
    tpu.vector_store %arg4[%c0_5, %c0_6], %33 {strides = array<i32>} : memref<128x5xf32, #tpu.memory_space<vmem>>, vector<128x5xf32>,
    return
  }
  func.func @transform_0(%arg0: i32) -> (i32, i32) {
    %c0_i32 = arith.constant 0 : i32
    %c0_i32_0 = arith.constant 0 : i32
    return %arg0, %c0_i32 : i32, i32
  }
  func.func @transform_1(%arg0: i32) -> (i32, i32) {
    %c0_i32 = arith.constant 0 : i32
    %c0_i32_0 = arith.constant 0 : i32
    %c0_i32_1 = arith.constant 0 : i32
    return %c0_i32, %c0_i32_0 : i32, i32
  }
  func.func @transform_2(%arg0: i32) -> (i32, i32) {
    %c0_i32 = arith.constant 0 : i32
    %c0_i32_0 = arith.constant 0 : i32
    %c0_i32_1 = arith.constant 0 : i32
    return %c0_i32, %c0_i32_0 : i32, i32
  }
  func.func @transform_3(%arg0: i32) -> (i32, i32) {
    %c0_i32 = arith.constant 0 : i32
    %c0_i32_0 = arith.constant 0 : i32
    return %arg0, %c0_i32 : i32, i32
  }
}

</mosaic_0001>

<llo_original>
// kernel: tpu_custom_call.1
$region0: #{tpu_custom_call.1}
  #allocation0 [shape = 'u32[]', space=smem, size = 0x4, offset = 0x4, fixed_abs, tag = 'smem constant byte address 0x4 - core index']
  #allocation1 [shape = 'u32[144,128]{1,0:T(1,128)}', space=vmem, size = 0x12000, scoped, tag = 'internal scratch']
  %s0 = inlined_call_operand.vmem [shape: f32[300,5], index: 0, kind: input, shape index: {}]
  %s1 = inlined_call_operand.vmem [shape: f32[5,5], index: 1, kind: input, shape index: {}]
  %s2 = inlined_call_operand.vmem [shape: f32[1,5], index: 2, kind: input, shape index: {}]
  %s3 = inlined_call_operand.vmem [shape: f32[300,5], index: 3, kind: output, shape index: {}]
  %s4 = sld [smem:[#allocation0]]
  $region93: #{tpu_custom_call.1} parent=0
    _
  %s6 = ssub.s32 1, %s4
  %s7 = scalar_select 0, %s6, %s4
  $region1: #{tpu_custom_call.1} parent=0
    #allocation2 [shape = 'u8[131072]{0}', space=vmem, size = 0x20000, scoped, tag = 'output window, operand 0']
    loop: start=0, step=1, limit=5
    $region2: #{tpu_custom_call.1} parent=1 // loop_pre_header
      _
    $region3: #{tpu_custom_call.1} parent=1 // loop_header
      %s9 = sphi 0, %s13
      %p10 = scmp.ge.s32.totalorder %s9, 5
      %s19 = sphi 0, %s21
      %s22 = sphi 0, %s19
      %s23 = sphi 0, %s22
      %s39 = sphi 0, %s23
      %s43 = sphi 0, %s43
      %s45 = sphi 0, %s43
      %s46 = sphi 0, %s45
      %s60 = sphi 0, %s46
      %s64 = sphi 0, %s64
      %s66 = sphi 0, %s64
      %s67 = sphi 0, %s66
      %s81 = sphi 0, %s67
      %s87 = sphi 0, %s89
      %s90 = sphi 0, %s87
      %s91 = sphi 0, %s90
      %s107 = sphi 0, %s91
    $region4: #{tpu_custom_call.1} parent=1 // loop_header_branch
      %12 = sbr.rel (%p10) target = $region8
    $region5: #{tpu_custom_call.1} parent=1 // loop_body
      %s14 = ssub.s32 %s9, 1
      %s15 = ssub.s32 %s9, 2
      %s16 = sadd.s32 %s9, 1
      %s17 = ssub.s32 %s9, %s16
      %p18 = scmp.eq.s32.totalorder %s17, 0
      %s20 = sadd.s32 %s19, 1
      %s21 = scalar_select %p18, %s19, %s20
      %p24 = pneg %p18
      %p25 = scmp.eq.s32.totalorder %s9, 2
      %p26 = por %p24, %p25
      %p27 = scmp.ne.s32.totalorder %s19, %s22
      %p28 = scmp.eq.s32.totalorder %s9, 0
      %p29 = por %p27, %p28
      %p30 = scmp.ne.s32.totalorder %s19, %s22
      %p31 = scmp.eq.s32.totalorder %s14, 2
      %p32 = por %p30, %p31
      %p33 = scmp.ne.s32.totalorder %s22, %s23
      %p34 = scmp.eq.s32.totalorder %s14, 0
      %p35 = por %p33, %p34
      %p36 = scmp.ne.s32.totalorder %s22, %s23
      %p37 = scmp.eq.s32.totalorder %s15, 2
      %p38 = por %p36, %p37
      %p40 = scmp.ne.s32.totalorder %s23, %s39
      %p41 = scmp.eq.s32.totalorder %s15, 0
      %p42 = por %p40, %p41
      %s44 = sadd.s32 %s43, 1
      %p47 = scmp.eq.s32.totalorder %s9, 2
      %p48 = scmp.ne.s32.totalorder %s43, %s45
      %p49 = scmp.eq.s32.totalorder %s9, 0
      %p50 = por %p48, %p49
      %p51 = scmp.ne.s32.totalorder %s43, %s45
      %p52 = scmp.eq.s32.totalorder %s14, 2
      %p53 = por %p51, %p52
      %p54 = scmp.ne.s32.totalorder %s45, %s46
      %p55 = scmp.eq.s32.totalorder %s14, 0
      %p56 = por %p54, %p55
      %p57 = scmp.ne.s32.totalorder %s45, %s46
      %p58 = scmp.eq.s32.totalorder %s15, 2
      %p59 = por %p57, %p58
      %p61 = scmp.ne.s32.totalorder %s46, %s60
      %p62 = scmp.eq.s32.totalorder %s15, 0
      %p63 = por %p61, %p62
      %s65 = sadd.s32 %s64, 1
      %p68 = scmp.eq.s32.totalorder %s9, 2
      %p69 = scmp.ne.s32.totalorder %s64, %s66
      %p70 = scmp.eq.s32.totalorder %s9, 0
      %p71 = por %p69, %p70
      %p72 = scmp.ne.s32.totalorder %s64, %s66
      %p73 = scmp.eq.s32.totalorder %s14, 2
      %p74 = por %p72, %p73
      %p75 = scmp.ne.s32.totalorder %s66, %s67
      %p76 = scmp.eq.s32.totalorder %s14, 0
      %p77 = por %p75, %p76
      %p78 = scmp.ne.s32.totalorder %s66, %s67
      %p79 = scmp.eq.s32.totalorder %s15, 2
      %p80 = por %p78, %p79
      %p82 = scmp.ne.s32.totalorder %s67, %s81
      %p83 = scmp.eq.s32.totalorder %s15, 0
      %p84 = por %p82, %p83
      %s85 = ssub.s32 %s9, %s16
      %p86 = scmp.eq.s32.totalorder %s85, 0
      %s88 = sadd.s32 %s87, 1
      %s89 = scalar_select %p86, %s87, %s88
      %p92 = pneg %p86
      %p93 = scmp.eq.s32.totalorder %s9, 2
      %p94 = por %p92, %p93
      %p95 = scmp.ne.s32.totalorder %s87, %s90
      %p96 = scmp.eq.s32.totalorder %s9, 0
      %p97 = por %p95, %p96
      %p98 = scmp.ne.s32.totalorder %s87, %s90
      %p99 = scmp.eq.s32.totalorder %s14, 2
      %p100 = por %p98, %p99
      %p101 = scmp.ne.s32.totalorder %s90, %s91
      %p102 = scmp.eq.s32.totalorder %s14, 0
      %p103 = por %p101, %p102
      %p104 = scmp.ne.s32.totalorder %s90, %s91
      %p105 = scmp.eq.s32.totalorder %s15, 2
      %p106 = por %p104, %p105
      %p108 = scmp.ne.s32.totalorder %s91, %s107
      %p109 = scmp.eq.s32.totalorder %s15, 0
      %p110 = por %p108, %p109
      %p111 = scmp.le.s32.totalorder 1, %s9
      %p112 = scmp.lt.s32.totalorder %s9, 4
      %p113 = pnand %p111, %p112
      %p114 = pneg %p113
      // Predicated region
      $region9: #{tpu_custom_call.1} parent=5 // pred_check
        _
      $region10: #{tpu_custom_call.1} parent=5 // pred_check_branch
        %116 = sbr.rel (%p113) target = $region12
      $region11: #{tpu_custom_call.1} parent=5 // pred_region
        %s117 = ssub.s32 %s9, 1
        // Predicated region
        $region13: #{tpu_custom_call.1} parent=11 // pred_check
          %p118 = pneg %p56
        $region14: #{tpu_custom_call.1} parent=11 // pred_check_branch
          %120 = sbr.rel (%p118) target = $region16
        $region15: #{tpu_custom_call.1} parent=11 // pred_region
          _
        $region16: #{tpu_custom_call.1} parent=11 // pred_fallthru
          _
        // Predicated region
        $region17: #{tpu_custom_call.1} parent=11 // pred_check
          %p121 = pneg %p77
        $region18: #{tpu_custom_call.1} parent=11 // pred_check_branch
          %123 = sbr.rel (%p121) target = $region20
        $region19: #{tpu_custom_call.1} parent=11 // pred_region
          _
        $region20: #{tpu_custom_call.1} parent=11 // pred_fallthru
          _
      $region12: #{tpu_custom_call.1} parent=5 // pred_fallthru
        _
      %p124 = scmp.lt.s32.totalorder %s9, 3
      // Predicated region
      $region21: #{tpu_custom_call.1} parent=5 // pred_check
        %p125 = pneg %p124
      $region22: #{tpu_custom_call.1} parent=5 // pred_check_branch
        %127 = sbr.rel (%p125) target = $region24
      $region23: #{tpu_custom_call.1} parent=5 // pred_region
        // Predicated region
        $region25: #{tpu_custom_call.1} parent=23 // pred_check
          %p128 = pneg %p29
        $region26: #{tpu_custom_call.1} parent=23 // pred_check_branch
          %130 = sbr.rel (%p128) target = $region28
        $region27: #{tpu_custom_call.1} parent=23 // pred_region
          %s131 = smul.u32 16, %s9
          %s132 = ssub.s32 38, %s131
          %p133 = scmp.lt.s32.totalorder %s132, 16
          %s134 = scalar_select %p133, %s132, 16
          %s135 = smul.u32 128, %s134
          %p136 = scmp.lt.s32.totalorder %s131, 37
          %s137 = scalar_select %p136, %s131, 37
          %s138 = smul.addr %s137, 8
          %s139 = scalar_lea.vmem %s0, %s138
          %s140 = smul.u32 16, %s9
          %s141 = ssub.s32 38, %s140
          %p142 = scmp.lt.s32.totalorder %s141, 16
          %s143 = scalar_select %p142, %s141, 16
          %s144 = smul.u32 128, %s143
        $region28: #{tpu_custom_call.1} parent=23 // pred_fallthru
          _
      $region24: #{tpu_custom_call.1} parent=5 // pred_fallthru
        _
      %p145 = scmp.le.s32.totalorder 1, %s9
      %p146 = scmp.lt.s32.totalorder %s9, 4
      %p147 = pnand %p145, %p146
      %p148 = pneg %p147
      // Predicated region
      $region29: #{tpu_custom_call.1} parent=5 // pred_check
        _
      $region30: #{tpu_custom_call.1} parent=5 // pred_check_branch
        %150 = sbr.rel (%p147) target = $region32
      $region31: #{tpu_custom_call.1} parent=5 // pred_region
        %s151 = ssub.s32 %s9, 1
        %s152 = smul.u32 16, %s14
        %s153 = ssub.s32 38, %s152
        %p154 = scmp.lt.s32.totalorder %s153, 16
        %s155 = scalar_select %p154, %s153, 16
        %s156 = smul.u32 128, %s155
        %p157 = scmp.lt.s32.totalorder %s152, 37
        %s158 = scalar_select %p157, %s152, 37
        %s159 = smul.addr %s158, 8
        %s160 = scalar_lea.vmem %s0, %s159
        %p161 = pneg %p35
        %p162 = pneg %p32
        %p163 = pneg %p56
        %p164 = pneg %p53
        %p165 = pneg %p77
        %p166 = pneg %p74
        %p167 = pneg %p103
        %p168 = pneg %p100
        %s169 = sand.u32 %s90, 1
        %s170 = sand.u32 %s90, 1
        %s171 = smul.addr %s170, 128
        %s172 = scalar_lea.vmem [#allocation2], %s171
        %s173 = smul.u32 16, %s14
        %s174 = ssub.s32 38, %s173
        %p175 = scmp.lt.s32.totalorder %s174, 16
        %s176 = scalar_select %p175, %s174, 16
        %s177 = smul.u32 128, %s176
        %p178 = scmp.lt.s32.totalorder %s173, 37
        %s179 = scalar_select %p178, %s173, 37
        %s180 = smul.addr %s179, 8
        %s181 = scalar_lea.vmem %s0, %s180
        %s182 = smul.u32 16, %s14
        %s183 = ssub.s32 38, %s182
        %p184 = scmp.lt.s32.totalorder %s183, 16
        %s185 = scalar_select %p184, %s183, 16
        %s186 = smul.u32 128, %s185
        %s187 = smul.u32 16, %s14
        %s188 = ssub.s32 38, %s187
        %p189 = scmp.lt.s32.totalorder %s188, 16
        %s190 = scalar_select %p189, %s188, 16
        %s191 = smul.u32 128, %s190
        %v192 = vld [vmem:[%s181] sm:$0xff]
        %v193 = vld [vmem:[%s181 + $0x8] sm:$0xff]
        %v194 = vld [vmem:[%s181 + $0x10] sm:$0xff]
        %v195 = vld [vmem:[%s181 + $0x18] sm:$0xff]
        %v196 = vld [vmem:[%s181 + $0x20] sm:$0xff]
        %v197 = vld [vmem:[%s181 + $0x28] sm:$0xff]
        %v198 = vld [vmem:[%s181 + $0x30] sm:$0xff]
        %v199 = vld [vmem:[%s181 + $0x38] sm:$0xff]
        %v200 = vld [vmem:[%s181 + $0x40] sm:$0xff]
        %v201 = vld [vmem:[%s181 + $0x48] sm:$0xff]
        %v202 = vld [vmem:[%s181 + $0x50] sm:$0xff]
        %v203 = vld [vmem:[%s181 + $0x58] sm:$0xff]
        %v204 = vld [vmem:[%s181 + $0x60] sm:$0xff]
        %v205 = vld [vmem:[%s181 + $0x68] sm:$0xff]
        %v206 = vld [vmem:[%s181 + $0x70] sm:$0xff]
        %v207 = vld [vmem:[%s181 + $0x78] sm:$0xff]
        %v208 = vld [vmem:[%s1] sm:$0x1f]
        %v209 = vld [vmem:[%s2] sm:$0x1]
        %211 = vset.pattern.permute.xlu0 0
        %212 = vperm.xlu0 %211, %v192
        %v213 = vpop.permute.xlu0 %212
        %216 = vset.pattern.permute.xlu0 0
        %217 = vperm.xlu0 %216, %v193
        %v218 = vpop.permute.xlu0 %217
        %221 = vset.pattern.permute.xlu0 0
        %222 = vperm.xlu0 %221, %v194
        %v223 = vpop.permute.xlu0 %222
        %226 = vset.pattern.permute.xlu0 0
        %227 = vperm.xlu0 %226, %v195
        %v228 = vpop.permute.xlu0 %227
        %231 = vset.pattern.permute.xlu0 0
        %232 = vperm.xlu0 %231, %v196
        %v233 = vpop.permute.xlu0 %232
        %236 = vset.pattern.permute.xlu0 0
        %237 = vperm.xlu0 %236, %v197
        %v238 = vpop.permute.xlu0 %237
        %241 = vset.pattern.permute.xlu0 0
        %242 = vperm.xlu0 %241, %v198
        %v243 = vpop.permute.xlu0 %242
        %246 = vset.pattern.permute.xlu0 0
        %247 = vperm.xlu0 %246, %v199
        %v248 = vpop.permute.xlu0 %247
        %251 = vset.pattern.permute.xlu0 0
        %252 = vperm.xlu0 %251, %v200
        %v253 = vpop.permute.xlu0 %252
        %256 = vset.pattern.permute.xlu0 0
        %257 = vperm.xlu0 %256, %v201
        %v258 = vpop.permute.xlu0 %257
        %261 = vset.pattern.permute.xlu0 0
        %262 = vperm.xlu0 %261, %v202
        %v263 = vpop.permute.xlu0 %262
        %266 = vset.pattern.permute.xlu0 0
        %267 = vperm.xlu0 %266, %v203
        %v268 = vpop.permute.xlu0 %267
        %271 = vset.pattern.permute.xlu0 0
        %272 = vperm.xlu0 %271, %v204
        %v273 = vpop.permute.xlu0 %272
        %276 = vset.pattern.permute.xlu0 0
        %277 = vperm.xlu0 %276, %v205
        %v278 = vpop.permute.xlu0 %277
        %281 = vset.pattern.permute.xlu0 0
        %282 = vperm.xlu0 %281, %v206
        %v283 = vpop.permute.xlu0 %282
        %286 = vset.pattern.permute.xlu0 0
        %287 = vperm.xlu0 %286, %v207
        %v288 = vpop.permute.xlu0 %287
        %v290 = vlaneseq
        %v291 = vshrl.u32 %v290, 7
        %v292 = vsub.s32 0, %v291
        %v293 = vrot.slane %v208, %v292
        %v294 = vmul.f32 %v213, %v293
        %v295 = vmul.f32 %v218, %v293
        %v296 = vmul.f32 %v223, %v293
        %v297 = vmul.f32 %v228, %v293
        %v298 = vmul.f32 %v233, %v293
        %v299 = vmul.f32 %v238, %v293
        %v300 = vmul.f32 %v243, %v293
        %v301 = vmul.f32 %v248, %v293
        %v302 = vmul.f32 %v253, %v293
        %v303 = vmul.f32 %v258, %v293
        %v304 = vmul.f32 %v263, %v293
        %v305 = vmul.f32 %v268, %v293
        %v306 = vmul.f32 %v273, %v293
        %v307 = vmul.f32 %v278, %v293
        %v308 = vmul.f32 %v283, %v293
        %v309 = vmul.f32 %v288, %v293
        %v311 = vlaneseq
        %v312 = vshrl.u32 %v311, 7
        %v313 = vsub.s32 0, %v312
        %v314 = vrot.slane %v209, %v313
        %v316 = vadd.f32 %v294, %v314
        %v317 = vadd.f32 %v295, %v314
        %v318 = vadd.f32 %v296, %v314
        %v319 = vadd.f32 %v297, %v314
        %v320 = vadd.f32 %v298, %v314
        %v321 = vadd.f32 %v299, %v314
        %v322 = vadd.f32 %v300, %v314
        %v323 = vadd.f32 %v301, %v314
        %v324 = vadd.f32 %v302, %v314
        %v325 = vadd.f32 %v303, %v314
        %v326 = vadd.f32 %v304, %v314
        %v327 = vadd.f32 %v305, %v314
        %v328 = vadd.f32 %v306, %v314
        %v329 = vadd.f32 %v307, %v314
        %v330 = vadd.f32 %v308, %v314
        %v331 = vadd.f32 %v309, %v314
        %332 = vset.pattern.permute.xlu0 1
        %333 = vperm.xlu0 %332, %v192
        %v334 = vpop.permute.xlu0 %333
        %336 = vset.pattern.permute.xlu0 1
        %337 = vperm.xlu0 %336, %v193
        %v338 = vpop.permute.xlu0 %337
        %340 = vset.pattern.permute.xlu0 1
        %341 = vperm.xlu0 %340, %v194
        %v342 = vpop.permute.xlu0 %341
        %344 = vset.pattern.permute.xlu0 1
        %345 = vperm.xlu0 %344, %v195
        %v346 = vpop.permute.xlu0 %345
        %348 = vset.pattern.permute.xlu0 1
        %349 = vperm.xlu0 %348, %v196
        %v350 = vpop.permute.xlu0 %349
        %352 = vset.pattern.permute.xlu0 1
        %353 = vperm.xlu0 %352, %v197
        %v354 = vpop.permute.xlu0 %353
        %356 = vset.pattern.permute.xlu0 1
        %357 = vperm.xlu0 %356, %v198
        %v358 = vpop.permute.xlu0 %357
        %360 = vset.pattern.permute.xlu0 1
        %361 = vperm.xlu0 %360, %v199
        %v362 = vpop.permute.xlu0 %361
        %364 = vset.pattern.permute.xlu0 1
        %365 = vperm.xlu0 %364, %v200
        %v366 = vpop.permute.xlu0 %365
        %368 = vset.pattern.permute.xlu0 1
        %369 = vperm.xlu0 %368, %v201
        %v370 = vpop.permute.xlu0 %369
        %372 = vset.pattern.permute.xlu0 1
        %373 = vperm.xlu0 %372, %v202
        %v374 = vpop.permute.xlu0 %373
        %376 = vset.pattern.permute.xlu0 1
        %377 = vperm.xlu0 %376, %v203
        %v378 = vpop.permute.xlu0 %377
        %380 = vset.pattern.permute.xlu0 1
        %381 = vperm.xlu0 %380, %v204
        %v382 = vpop.permute.xlu0 %381
        %384 = vset.pattern.permute.xlu0 1
        %385 = vperm.xlu0 %384, %v205
        %v386 = vpop.permute.xlu0 %385
        %388 = vset.pattern.permute.xlu0 1
        %389 = vperm.xlu0 %388, %v206
        %v390 = vpop.permute.xlu0 %389
        %392 = vset.pattern.permute.xlu0 1
        %393 = vperm.xlu0 %392, %v207
        %v394 = vpop.permute.xlu0 %393
        %v396 = vlaneseq
        %v397 = vshrl.u32 %v396, 7
        %v398 = vsub.s32 1, %v397
        %v399 = vrot.slane %v208, %v398
        %v400 = vmul.f32 %v334, %v399
        %v401 = vmul.f32 %v338, %v399
        %v402 = vmul.f32 %v342, %v399
        %v403 = vmul.f32 %v346, %v399
        %v404 = vmul.f32 %v350, %v399
        %v405 = vmul.f32 %v354, %v399
        %v406 = vmul.f32 %v358, %v399
        %v407 = vmul.f32 %v362, %v399
        %v408 = vmul.f32 %v366, %v399
        %v409 = vmul.f32 %v370, %v399
        %v410 = vmul.f32 %v374, %v399
        %v411 = vmul.f32 %v378, %v399
        %v412 = vmul.f32 %v382, %v399
        %v413 = vmul.f32 %v386, %v399
        %v414 = vmul.f32 %v390, %v399
        %v415 = vmul.f32 %v394, %v399
        %v416 = vadd.f32 %v316, %v400
        %v417 = vadd.f32 %v317, %v401
        %v418 = vadd.f32 %v318, %v402
        %v419 = vadd.f32 %v319, %v403
        %v420 = vadd.f32 %v320, %v404
        %v421 = vadd.f32 %v321, %v405
        %v422 = vadd.f32 %v322, %v406
        %v423 = vadd.f32 %v323, %v407
        %v424 = vadd.f32 %v324, %v408
        %v425 = vadd.f32 %v325, %v409
        %v426 = vadd.f32 %v326, %v410
        %v427 = vadd.f32 %v327, %v411
        %v428 = vadd.f32 %v328, %v412
        %v429 = vadd.f32 %v329, %v413
        %v430 = vadd.f32 %v330, %v414
        %v431 = vadd.f32 %v331, %v415
        %432 = vset.pattern.permute.xlu0 2
        %433 = vperm.xlu0 %432, %v192
        %v434 = vpop.permute.xlu0 %433
        %436 = vset.pattern.permute.xlu0 2
        %437 = vperm.xlu0 %436, %v193
        %v438 = vpop.permute.xlu0 %437
        %440 = vset.pattern.permute.xlu0 2
        %441 = vperm.xlu0 %440, %v194
        %v442 = vpop.permute.xlu0 %441
        %444 = vset.pattern.permute.xlu0 2
        %445 = vperm.xlu0 %444, %v195
        %v446 = vpop.permute.xlu0 %445
        %448 = vset.pattern.permute.xlu0 2
        %449 = vperm.xlu0 %448, %v196
        %v450 = vpop.permute.xlu0 %449
        %452 = vset.pattern.permute.xlu0 2
        %453 = vperm.xlu0 %452, %v197
        %v454 = vpop.permute.xlu0 %453
        %456 = vset.pattern.permute.xlu0 2
        %457 = vperm.xlu0 %456, %v198
        %v458 = vpop.permute.xlu0 %457
        %460 = vset.pattern.permute.xlu0 2
        %461 = vperm.xlu0 %460, %v199
        %v462 = vpop.permute.xlu0 %461
        %464 = vset.pattern.permute.xlu0 2
        %465 = vperm.xlu0 %464, %v200
        %v466 = vpop.permute.xlu0 %465
        %468 = vset.pattern.permute.xlu0 2
        %469 = vperm.xlu0 %468, %v201
        %v470 = vpop.permute.xlu0 %469
        %472 = vset.pattern.permute.xlu0 2
        %473 = vperm.xlu0 %472, %v202
        %v474 = vpop.permute.xlu0 %473
        %476 = vset.pattern.permute.xlu0 2
        %477 = vperm.xlu0 %476, %v203
        %v478 = vpop.permute.xlu0 %477
        %480 = vset.pattern.permute.xlu0 2
        %481 = vperm.xlu0 %480, %v204
        %v482 = vpop.permute.xlu0 %481
        %484 = vset.pattern.permute.xlu0 2
        %485 = vperm.xlu0 %484, %v205
        %v486 = vpop.permute.xlu0 %485
        %488 = vset.pattern.permute.xlu0 2
        %489 = vperm.xlu0 %488, %v206
        %v490 = vpop.permute.xlu0 %489
        %492 = vset.pattern.permute.xlu0 2
        %493 = vperm.xlu0 %492, %v207
        %v494 = vpop.permute.xlu0 %493
        %v496 = vlaneseq
        %v497 = vshrl.u32 %v496, 7
        %v498 = vsub.s32 2, %v497
        %v499 = vrot.slane %v208, %v498
        %v500 = vmul.f32 %v434, %v499
        %v501 = vmul.f32 %v438, %v499
        %v502 = vmul.f32 %v442, %v499
        %v503 = vmul.f32 %v446, %v499
        %v504 = vmul.f32 %v450, %v499
        %v505 = vmul.f32 %v454, %v499
        %v506 = vmul.f32 %v458, %v499
        %v507 = vmul.f32 %v462, %v499
        %v508 = vmul.f32 %v466, %v499
        %v509 = vmul.f32 %v470, %v499
        %v510 = vmul.f32 %v474, %v499
        %v511 = vmul.f32 %v478, %v499
        %v512 = vmul.f32 %v482, %v499
        %v513 = vmul.f32 %v486, %v499
        %v514 = vmul.f32 %v490, %v499
        %v515 = vmul.f32 %v494, %v499
        %v516 = vadd.f32 %v416, %v500
        %v517 = vadd.f32 %v417, %v501
        %v518 = vadd.f32 %v418, %v502
        %v519 = vadd.f32 %v419, %v503
        %v520 = vadd.f32 %v420, %v504
        %v521 = vadd.f32 %v421, %v505
        %v522 = vadd.f32 %v422, %v506
        %v523 = vadd.f32 %v423, %v507
        %v524 = vadd.f32 %v424, %v508
        %v525 = vadd.f32 %v425, %v509
        %v526 = vadd.f32 %v426, %v510
        %v527 = vadd.f32 %v427, %v511
        %v528 = vadd.f32 %v428, %v512
        %v529 = vadd.f32 %v429, %v513
        %v530 = vadd.f32 %v430, %v514
        %v531 = vadd.f32 %v431, %v515
        %532 = vset.pattern.permute.xlu0 3
        %533 = vperm.xlu0 %532, %v192
        %v534 = vpop.permute.xlu0 %533
        %536 = vset.pattern.permute.xlu0 3
        %537 = vperm.xlu0 %536, %v193
        %v538 = vpop.permute.xlu0 %537
        %540 = vset.pattern.permute.xlu0 3
        %541 = vperm.xlu0 %540, %v194
        %v542 = vpop.permute.xlu0 %541
        %544 = vset.pattern.permute.xlu0 3
        %545 = vperm.xlu0 %544, %v195
        %v546 = vpop.permute.xlu0 %545
        %548 = vset.pattern.permute.xlu0 3
        %549 = vperm.xlu0 %548, %v196
        %v550 = vpop.permute.xlu0 %549
        %552 = vset.pattern.permute.xlu0 3
        %553 = vperm.xlu0 %552, %v197
        %v554 = vpop.permute.xlu0 %553
        %556 = vset.pattern.permute.xlu0 3
        %557 = vperm.xlu0 %556, %v198
        %v558 = vpop.permute.xlu0 %557
        %560 = vset.pattern.permute.xlu0 3
        %561 = vperm.xlu0 %560, %v199
        %v562 = vpop.permute.xlu0 %561
        %564 = vset.pattern.permute.xlu0 3
        %565 = vperm.xlu0 %564, %v200
        %v566 = vpop.permute.xlu0 %565
        %568 = vset.pattern.permute.xlu0 3
        %569 = vperm.xlu0 %568, %v201
        %v570 = vpop.permute.xlu0 %569
        %572 = vset.pattern.permute.xlu0 3
        %573 = vperm.xlu0 %572, %v202
        %v574 = vpop.permute.xlu0 %573
        %576 = vset.pattern.permute.xlu0 3
        %577 = vperm.xlu0 %576, %v203
        %v578 = vpop.permute.xlu0 %577
        %580 = vset.pattern.permute.xlu0 3
        %581 = vperm.xlu0 %580, %v204
        %v582 = vpop.permute.xlu0 %581
        %584 = vset.pattern.permute.xlu0 3
        %585 = vperm.xlu0 %584, %v205
        %v586 = vpop.permute.xlu0 %585
        %588 = vset.pattern.permute.xlu0 3
        %589 = vperm.xlu0 %588, %v206
        %v590 = vpop.permute.xlu0 %589
        %592 = vset.pattern.permute.xlu0 3
        %593 = vperm.xlu0 %592, %v207
        %v594 = vpop.permute.xlu0 %593
        %v596 = vlaneseq
        %v597 = vshrl.u32 %v596, 7
        %v598 = vsub.s32 3, %v597
        %v599 = vrot.slane %v208, %v598
        %v600 = vmul.f32 %v534, %v599
        %v601 = vmul.f32 %v538, %v599
        %v602 = vmul.f32 %v542, %v599
        %v603 = vmul.f32 %v546, %v599
        %v604 = vmul.f32 %v550, %v599
        %v605 = vmul.f32 %v554, %v599
        %v606 = vmul.f32 %v558, %v599
        %v607 = vmul.f32 %v562, %v599
        %v608 = vmul.f32 %v566, %v599
        %v609 = vmul.f32 %v570, %v599
        %v610 = vmul.f32 %v574, %v599
        %v611 = vmul.f32 %v578, %v599
        %v612 = vmul.f32 %v582, %v599
        %v613 = vmul.f32 %v586, %v599
        %v614 = vmul.f32 %v590, %v599
        %v615 = vmul.f32 %v594, %v599
        %v616 = vadd.f32 %v516, %v600
        %v617 = vadd.f32 %v517, %v601
        %v618 = vadd.f32 %v518, %v602
        %v619 = vadd.f32 %v519, %v603
        %v620 = vadd.f32 %v520, %v604
        %v621 = vadd.f32 %v521, %v605
        %v622 = vadd.f32 %v522, %v606
        %v623 = vadd.f32 %v523, %v607
        %v624 = vadd.f32 %v524, %v608
        %v625 = vadd.f32 %v525, %v609
        %v626 = vadd.f32 %v526, %v610
        %v627 = vadd.f32 %v527, %v611
        %v628 = vadd.f32 %v528, %v612
        %v629 = vadd.f32 %v529, %v613
        %v630 = vadd.f32 %v530, %v614
        %v631 = vadd.f32 %v531, %v615
        %632 = vset.pattern.permute.xlu0 4
        %633 = vperm.xlu0 %632, %v192
        %v634 = vpop.permute.xlu0 %633
        %636 = vset.pattern.permute.xlu0 4
        %637 = vperm.xlu0 %636, %v193
        %v638 = vpop.permute.xlu0 %637
        %640 = vset.pattern.permute.xlu0 4
        %641 = vperm.xlu0 %640, %v194
        %v642 = vpop.permute.xlu0 %641
        %644 = vset.pattern.permute.xlu0 4
        %645 = vperm.xlu0 %644, %v195
        %v646 = vpop.permute.xlu0 %645
        %648 = vset.pattern.permute.xlu0 4
        %649 = vperm.xlu0 %648, %v196
        %v650 = vpop.permute.xlu0 %649
        %652 = vset.pattern.permute.xlu0 4
        %653 = vperm.xlu0 %652, %v197
        %v654 = vpop.permute.xlu0 %653
        %656 = vset.pattern.permute.xlu0 4
        %657 = vperm.xlu0 %656, %v198
        %v658 = vpop.permute.xlu0 %657
        %660 = vset.pattern.permute.xlu0 4
        %661 = vperm.xlu0 %660, %v199
        %v662 = vpop.permute.xlu0 %661
        %664 = vset.pattern.permute.xlu0 4
        %665 = vperm.xlu0 %664, %v200
        %v666 = vpop.permute.xlu0 %665
        %668 = vset.pattern.permute.xlu0 4
        %669 = vperm.xlu0 %668, %v201
        %v670 = vpop.permute.xlu0 %669
        %672 = vset.pattern.permute.xlu0 4
        %673 = vperm.xlu0 %672, %v202
        %v674 = vpop.permute.xlu0 %673
        %676 = vset.pattern.permute.xlu0 4
        %677 = vperm.xlu0 %676, %v203
        %v678 = vpop.permute.xlu0 %677
        %680 = vset.pattern.permute.xlu0 4
        %681 = vperm.xlu0 %680, %v204
        %v682 = vpop.permute.xlu0 %681
        %684 = vset.pattern.permute.xlu0 4
        %685 = vperm.xlu0 %684, %v205
        %v686 = vpop.permute.xlu0 %685
        %688 = vset.pattern.permute.xlu0 4
        %689 = vperm.xlu0 %688, %v206
        %v690 = vpop.permute.xlu0 %689
        %692 = vset.pattern.permute.xlu0 4
        %693 = vperm.xlu0 %692, %v207
        %v694 = vpop.permute.xlu0 %693
        %v696 = vlaneseq
        %v697 = vshrl.u32 %v696, 7
        %v698 = vsub.s32 4, %v697
        %v699 = vrot.slane %v208, %v698
        %v700 = vmul.f32 %v634, %v699
        %v701 = vmul.f32 %v638, %v699
        %v702 = vmul.f32 %v642, %v699
        %v703 = vmul.f32 %v646, %v699
        %v704 = vmul.f32 %v650, %v699
        %v705 = vmul.f32 %v654, %v699
        %v706 = vmul.f32 %v658, %v699
        %v707 = vmul.f32 %v662, %v699
        %v708 = vmul.f32 %v666, %v699
        %v709 = vmul.f32 %v670, %v699
        %v710 = vmul.f32 %v674, %v699
        %v711 = vmul.f32 %v678, %v699
        %v712 = vmul.f32 %v682, %v699
        %v713 = vmul.f32 %v686, %v699
        %v714 = vmul.f32 %v690, %v699
        %v715 = vmul.f32 %v694, %v699
        %v716 = vadd.f32 %v616, %v700
        %v717 = vadd.f32 %v617, %v701
        %v718 = vadd.f32 %v618, %v702
        %v719 = vadd.f32 %v619, %v703
        %v720 = vadd.f32 %v620, %v704
        %v721 = vadd.f32 %v621, %v705
        %v722 = vadd.f32 %v622, %v706
        %v723 = vadd.f32 %v623, %v707
        %v724 = vadd.f32 %v624, %v708
        %v725 = vadd.f32 %v625, %v709
        %v726 = vadd.f32 %v626, %v710
        %v727 = vadd.f32 %v627, %v711
        %v728 = vadd.f32 %v628, %v712
        %v729 = vadd.f32 %v629, %v713
        %v730 = vadd.f32 %v630, %v714
        %v731 = vadd.f32 %v631, %v715
        %vm732 = vcmask 39936
        %733 = vst.msk [vmem:[%s172] sm:$0xff] %vm732, %v716
        %734 = vst.msk [vmem:[%s172 + $0x8] sm:$0xff] %vm732, %v717
        %735 = vst.msk [vmem:[%s172 + $0x10] sm:$0xff] %vm732, %v718
        %736 = vst.msk [vmem:[%s172 + $0x18] sm:$0xff] %vm732, %v719
        %737 = vst.msk [vmem:[%s172 + $0x20] sm:$0xff] %vm732, %v720
        %738 = vst.msk [vmem:[%s172 + $0x28] sm:$0xff] %vm732, %v721
        %739 = vst.msk [vmem:[%s172 + $0x30] sm:$0xff] %vm732, %v722
        %740 = vst.msk [vmem:[%s172 + $0x38] sm:$0xff] %vm732, %v723
        %741 = vst.msk [vmem:[%s172 + $0x40] sm:$0xff] %vm732, %v724
        %742 = vst.msk [vmem:[%s172 + $0x48] sm:$0xff] %vm732, %v725
        %743 = vst.msk [vmem:[%s172 + $0x50] sm:$0xff] %vm732, %v726
        %744 = vst.msk [vmem:[%s172 + $0x58] sm:$0xff] %vm732, %v727
        %745 = vst.msk [vmem:[%s172 + $0x60] sm:$0xff] %vm732, %v728
        %746 = vst.msk [vmem:[%s172 + $0x68] sm:$0xff] %vm732, %v729
        %747 = vst.msk [vmem:[%s172 + $0x70] sm:$0xff] %vm732, %v730
        %748 = vst.msk [vmem:[%s172 + $0x78] sm:$0xff] %vm732, %v731
        %s749 = sand.u32 %s90, 1
        %s750 = sand.u32 %s90, 1
        %s751 = smul.addr %s750, 128
        %s752 = scalar_lea.vmem [#allocation2], %s751
        // Predicated region
        $region33: #{tpu_custom_call.1} parent=31 // pred_check
          %p753 = pneg %p100
        $region34: #{tpu_custom_call.1} parent=31 // pred_check_branch
          %755 = sbr.rel (%p753) target = $region36
        $region35: #{tpu_custom_call.1} parent=31 // pred_region
          %s756 = smul.u32 16, %s14
          %s757 = ssub.s32 38, %s756
          %p758 = scmp.lt.s32.totalorder %s757, 16
          %s759 = scalar_select %p758, %s757, 16
          %s760 = smul.u32 128, %s759
          %p761 = scmp.ne.s32.totalorder 0, %s760
          %s762 = smul.addr %s756, 8
          %s763 = scalar_lea.vmem %s3, %s762
          // Predicated region
          $region37: #{tpu_custom_call.1} parent=35 // pred_check
            %p764 = pneg %p761
          $region38: #{tpu_custom_call.1} parent=35 // pred_check_branch
            %766 = sbr.rel (%p764) target = $region40
          $region39: #{tpu_custom_call.1} parent=35 // pred_region
            // Predicated region
            $region41: #{tpu_custom_call.1} parent=39 // pred_check
              _
            $region42: #{tpu_custom_call.1} parent=39 // pred_check_branch
              %768 = sbr.rel (0) target = $region44
            $region43: #{tpu_custom_call.1} parent=39 // pred_region
              // Predicated region
              $region63: #{tpu_custom_call.1} parent=43 // pred_check
                _
              $region64: #{tpu_custom_call.1} parent=43 // pred_check_branch
                %847 = sbr.rel (0) target = $region66
              $region65: #{tpu_custom_call.1} parent=43 // pred_region
                %s848 = sshrl.u32 %s759, 4
                // While loop
                $region67: #{tpu_custom_call.1} parent=65 // loop_pre_header
                  _
                $region68: #{tpu_custom_call.1} parent=65 // loop_header
                  %s850 = sphi 0, %s852
                  %p851 = scmp.ge.s32.totalorder %s850, %s848
                  %s855 = sphi 0, %s892
                  %s856 = sphi %s752, %s895
                  %s857 = sphi %s763, %s896
                $region69: #{tpu_custom_call.1} parent=65 // loop_header_branch
                  %854 = sbr.rel (%p851) target = $region73
                $region70: #{tpu_custom_call.1} parent=65 // loop_body
                  %v858 = vld [vmem:[%s856] sm:$0xff]
                  %859 = vst [vmem:[%s857] sm:$0xff] %v858
                  %v860 = vld [vmem:[%s856 + $0x8] sm:$0xff]
                  %861 = vst [vmem:[%s857 + $0x8] sm:$0xff] %v860
                  %v862 = vld [vmem:[%s856 + $0x10] sm:$0xff]
                  %863 = vst [vmem:[%s857 + $0x10] sm:$0xff] %v862
                  %v864 = vld [vmem:[%s856 + $0x18] sm:$0xff]
                  %865 = vst [vmem:[%s857 + $0x18] sm:$0xff] %v864
                  %v866 = vld [vmem:[%s856 + $0x20] sm:$0xff]
                  %867 = vst [vmem:[%s857 + $0x20] sm:$0xff] %v866
                  %v868 = vld [vmem:[%s856 + $0x28] sm:$0xff]
                  %869 = vst [vmem:[%s857 + $0x28] sm:$0xff] %v868
                  %v870 = vld [vmem:[%s856 + $0x30] sm:$0xff]
                  %871 = vst [vmem:[%s857 + $0x30] sm:$0xff] %v870
                  %v872 = vld [vmem:[%s856 + $0x38] sm:$0xff]
                  %873 = vst [vmem:[%s857 + $0x38] sm:$0xff] %v872
                  %v874 = vld [vmem:[%s856 + $0x40] sm:$0xff]
                  %875 = vst [vmem:[%s857 + $0x40] sm:$0xff] %v874
                  %v876 = vld [vmem:[%s856 + $0x48] sm:$0xff]
                  %877 = vst [vmem:[%s857 + $0x48] sm:$0xff] %v876
                  %v878 = vld [vmem:[%s856 + $0x50] sm:$0xff]
                  %879 = vst [vmem:[%s857 + $0x50] sm:$0xff] %v878
                  %v880 = vld [vmem:[%s856 + $0x58] sm:$0xff]
                  %881 = vst [vmem:[%s857 + $0x58] sm:$0xff] %v880
                  %v882 = vld [vmem:[%s856 + $0x60] sm:$0xff]
                  %883 = vst [vmem:[%s857 + $0x60] sm:$0xff] %v882
                  %v884 = vld [vmem:[%s856 + $0x68] sm:$0xff]
                  %885 = vst [vmem:[%s857 + $0x68] sm:$0xff] %v884
                  %v886 = vld [vmem:[%s856 + $0x70] sm:$0xff]
                  %887 = vst [vmem:[%s857 + $0x70] sm:$0xff] %v886
                  %v888 = vld [vmem:[%s856 + $0x78] sm:$0xff]
                  %889 = vst [vmem:[%s857 + $0x78] sm:$0xff] %v888
                  %s890 = sadd.s32 1, %s855
                  %p891 = scmp.ge.s32.totalorder %s890, %s848
                  %s892 = scalar_select %p891, 0, %s890
                  %s893 = smul.u32 %s892, 128
                  %s894 = smul.u32 %s892, 128
                  %s895 = scalar_lea.vmem %s752, %s893 [#allocation2]
                  %s896 = scalar_lea.vmem %s763, %s894
                $region71: #{tpu_custom_call.1} parent=65 // loop_footer
                  %s852 = sadd.s32 %s850, 1
                $region72: #{tpu_custom_call.1} parent=65 // loop_footer_branch
                  %849 = sbr.rel target = $region68
                $region73: #{tpu_custom_call.1} parent=65 // loop_exit
                  _
                %s897 = sshrl.u32 %s759, 4
                %s898 = sand.u32 %s759, 15
                %s899 = smul.u32 %s897, 16
                %s900 = smul.u32 8, %s899
                %s901 = scalar_lea.vmem %s752, %s900 [#allocation2]
                %s902 = smul.u32 8, %s899
                %s903 = scalar_lea.vmem %s763, %s902
                // While loop
                $region74: #{tpu_custom_call.1} parent=65 // loop_pre_header
                  _
                $region75: #{tpu_custom_call.1} parent=65 // loop_header
                  %s905 = sphi 0, %s907
                  %p906 = scmp.ge.s32.totalorder %s905, %s898
                  %s910 = sphi 0, %s917
                  %s911 = sphi %s901, %s920
                  %s912 = sphi %s903, %s921
                $region76: #{tpu_custom_call.1} parent=65 // loop_header_branch
                  %909 = sbr.rel (%p906) target = $region80
                $region77: #{tpu_custom_call.1} parent=65 // loop_body
                  %v913 = vld [vmem:[%s911] sm:$0xff]
                  %914 = vst [vmem:[%s912] sm:$0xff] %v913
                  %s915 = sadd.s32 1, %s910
                  %p916 = scmp.ge.s32.totalorder %s915, %s898
                  %s917 = scalar_select %p916, 0, %s915
                  %s918 = smul.u32 %s917, 8
                  %s919 = smul.u32 %s917, 8
                  %s920 = scalar_lea.vmem %s901, %s918 [#allocation2]
                  %s921 = scalar_lea.vmem %s903, %s919
                $region78: #{tpu_custom_call.1} parent=65 // loop_footer
                  %s907 = sadd.s32 %s905, 1
                $region79: #{tpu_custom_call.1} parent=65 // loop_footer_branch
                  %904 = sbr.rel target = $region75
                $region80: #{tpu_custom_call.1} parent=65 // loop_exit
                  _
              $region66: #{tpu_custom_call.1} parent=43 // pred_fallthru
                _
              // Predicated region
              $region81: #{tpu_custom_call.1} parent=43 // pred_check
                _
              $region82: #{tpu_custom_call.1} parent=43 // pred_check_branch
                %923 = sbr.rel target = $region84
              $region83: #{tpu_custom_call.1} parent=43 // pred_region
                _
              $region84: #{tpu_custom_call.1} parent=43 // pred_fallthru
                _
            $region44: #{tpu_custom_call.1} parent=39 // pred_fallthru
              _
            // Predicated region
            $region45: #{tpu_custom_call.1} parent=39 // pred_check
              _
            $region46: #{tpu_custom_call.1} parent=39 // pred_check_branch
              %770 = sbr.rel target = $region48
            $region47: #{tpu_custom_call.1} parent=39 // pred_region
              %s772 = sshrl.u32 %s759, 4
              // While loop
              $region49: #{tpu_custom_call.1} parent=47 // loop_pre_header
                _
              $region50: #{tpu_custom_call.1} parent=47 // loop_header
                %s774 = sphi 0, %s776
                %p775 = scmp.ge.s32.totalorder %s774, %s772
                %s779 = sphi 0, %s816
                %s780 = sphi %s752, %s819
                %s781 = sphi %s763, %s820
              $region51: #{tpu_custom_call.1} parent=47 // loop_header_branch
                %778 = sbr.rel (%p775) target = $region55
              $region52: #{tpu_custom_call.1} parent=47 // loop_body
                %v782 = vld [vmem:[%s780] sm:$0xff]
                %783 = vst [vmem:[%s781] sm:$0xff] %v782
                %v784 = vld [vmem:[%s780 + $0x8] sm:$0xff]
                %785 = vst [vmem:[%s781 + $0x8] sm:$0xff] %v784
                %v786 = vld [vmem:[%s780 + $0x10] sm:$0xff]
                %787 = vst [vmem:[%s781 + $0x10] sm:$0xff] %v786
                %v788 = vld [vmem:[%s780 + $0x18] sm:$0xff]
                %789 = vst [vmem:[%s781 + $0x18] sm:$0xff] %v788
                %v790 = vld [vmem:[%s780 + $0x20] sm:$0xff]
                %791 = vst [vmem:[%s781 + $0x20] sm:$0xff] %v790
                %v792 = vld [vmem:[%s780 + $0x28] sm:$0xff]
                %793 = vst [vmem:[%s781 + $0x28] sm:$0xff] %v792
                %v794 = vld [vmem:[%s780 + $0x30] sm:$0xff]
                %795 = vst [vmem:[%s781 + $0x30] sm:$0xff] %v794
                %v796 = vld [vmem:[%s780 + $0x38] sm:$0xff]
                %797 = vst [vmem:[%s781 + $0x38] sm:$0xff] %v796
                %v798 = vld [vmem:[%s780 + $0x40] sm:$0xff]
                %799 = vst [vmem:[%s781 + $0x40] sm:$0xff] %v798
                %v800 = vld [vmem:[%s780 + $0x48] sm:$0xff]
                %801 = vst [vmem:[%s781 + $0x48] sm:$0xff] %v800
                %v802 = vld [vmem:[%s780 + $0x50] sm:$0xff]
                %803 = vst [vmem:[%s781 + $0x50] sm:$0xff] %v802
                %v804 = vld [vmem:[%s780 + $0x58] sm:$0xff]
                %805 = vst [vmem:[%s781 + $0x58] sm:$0xff] %v804
                %v806 = vld [vmem:[%s780 + $0x60] sm:$0xff]
                %807 = vst [vmem:[%s781 + $0x60] sm:$0xff] %v806
                %v808 = vld [vmem:[%s780 + $0x68] sm:$0xff]
                %809 = vst [vmem:[%s781 + $0x68] sm:$0xff] %v808
                %v810 = vld [vmem:[%s780 + $0x70] sm:$0xff]
                %811 = vst [vmem:[%s781 + $0x70] sm:$0xff] %v810
                %v812 = vld [vmem:[%s780 + $0x78] sm:$0xff]
                %813 = vst [vmem:[%s781 + $0x78] sm:$0xff] %v812
                %s814 = sadd.s32 1, %s779
                %p815 = scmp.ge.s32.totalorder %s814, %s772
                %s816 = scalar_select %p815, 0, %s814
                %s817 = smul.u32 %s816, 128
                %s818 = smul.u32 %s816, 128
                %s819 = scalar_lea.vmem %s752, %s817 [#allocation2]
                %s820 = scalar_lea.vmem %s763, %s818
              $region53: #{tpu_custom_call.1} parent=47 // loop_footer
                %s776 = sadd.s32 %s774, 1
              $region54: #{tpu_custom_call.1} parent=47 // loop_footer_branch
                %773 = sbr.rel target = $region50
              $region55: #{tpu_custom_call.1} parent=47 // loop_exit
                _
              %s821 = sshrl.u32 %s759, 4
              %s822 = sand.u32 %s759, 15
              %s823 = smul.u32 %s821, 16
              %s824 = smul.u32 8, %s823
              %s825 = scalar_lea.vmem %s752, %s824 [#allocation2]
              %s826 = smul.u32 8, %s823
              %s827 = scalar_lea.vmem %s763, %s826
              // While loop
              $region56: #{tpu_custom_call.1} parent=47 // loop_pre_header
                _
              $region57: #{tpu_custom_call.1} parent=47 // loop_header
                %s829 = sphi 0, %s831
                %p830 = scmp.ge.s32.totalorder %s829, %s822
                %s834 = sphi 0, %s841
                %s835 = sphi %s825, %s844
                %s836 = sphi %s827, %s845
              $region58: #{tpu_custom_call.1} parent=47 // loop_header_branch
                %833 = sbr.rel (%p830) target = $region62
              $region59: #{tpu_custom_call.1} parent=47 // loop_body
                %v837 = vld [vmem:[%s835] sm:$0xff]
                %838 = vst [vmem:[%s836] sm:$0xff] %v837
                %s839 = sadd.s32 1, %s834
                %p840 = scmp.ge.s32.totalorder %s839, %s822
                %s841 = scalar_select %p840, 0, %s839
                %s842 = smul.u32 %s841, 8
                %s843 = smul.u32 %s841, 8
                %s844 = scalar_lea.vmem %s825, %s842 [#allocation2]
                %s845 = scalar_lea.vmem %s827, %s843
              $region60: #{tpu_custom_call.1} parent=47 // loop_footer
                %s831 = sadd.s32 %s829, 1
              $region61: #{tpu_custom_call.1} parent=47 // loop_footer_branch
                %828 = sbr.rel target = $region57
              $region62: #{tpu_custom_call.1} parent=47 // loop_exit
                _
            $region48: #{tpu_custom_call.1} parent=39 // pred_fallthru
              _
          $region40: #{tpu_custom_call.1} parent=35 // pred_fallthru
            _
          %924 = vnop
        $region36: #{tpu_custom_call.1} parent=31 // pred_fallthru
          _
      $region32: #{tpu_custom_call.1} parent=5 // pred_fallthru
        _
      %p925 = scmp.le.s32.totalorder 2, %s9
      // Predicated region
      $region85: #{tpu_custom_call.1} parent=5 // pred_check
        %p926 = pneg %p925
      $region86: #{tpu_custom_call.1} parent=5 // pred_check_branch
        %928 = sbr.rel (%p926) target = $region88
      $region87: #{tpu_custom_call.1} parent=5 // pred_region
        %s929 = ssub.s32 %s9, 2
        // Predicated region
        $region89: #{tpu_custom_call.1} parent=87 // pred_check
          %p930 = pneg %p106
        $region90: #{tpu_custom_call.1} parent=87 // pred_check_branch
          %932 = sbr.rel (%p930) target = $region92
        $region91: #{tpu_custom_call.1} parent=87 // pred_region
          %s933 = sand.u32 %s91, 1
          %s934 = sand.u32 %s91, 1
          %s935 = smul.addr %s934, 128
          %s936 = scalar_lea.vmem [#allocation2], %s935
        $region92: #{tpu_custom_call.1} parent=87 // pred_fallthru
          _
      $region88: #{tpu_custom_call.1} parent=5 // pred_fallthru
        _
    $region6: #{tpu_custom_call.1} parent=1 // loop_footer
      %s13 = sadd.s32 1, %s9
    $region7: #{tpu_custom_call.1} parent=1 // loop_footer_branch
      %8 = sbr.rel target = $region3
    $region8: #{tpu_custom_call.1} parent=1 // loop_exit
      _

</llo_original>
